<compile_context>
chip_gen: v7x
topology: tpu7x:2x2x1
jax: 0.10.0
libtpu: 0.0.40
codegen_flags: <defaults>
</compile_context>

<pallas_src>
import functools

import jax
import jax.numpy as jnp
import numpy as np
from jax import lax
from jax.experimental import pallas as pl
from jax.experimental.pallas import tpu as pltpu

_LANES = 128
_SUBLANES = 8
_VMEM_LIMIT = 48 * 1024 * 1024  # scoped VMEM; < 64 MiB physical on v7x


def _round_up(x, m):
    return ((x + m - 1) // m) * m


def _round_down(x, m):
    return (x // m) * m


def _tile_budget_bytes():
    """Per-step combined-input DMA budget (x2 under double-buffering)."""
    try:
        vmem = int(getattr(pltpu.get_tpu_info(), "vmem_capacity_bytes", 128 << 20))
    except Exception:  # pragma: no cover - info query unavailable
        vmem = 128 << 20
    # v7x (64 MiB VMEM, ~3.2 TB/s HBM): bigger tiles amortize the ~0.35us/step
    # overhead. v5e/v6e (128 MiB VMEM, slower HBM): 4 MiB is already >=3us DMA.
    return (8 << 20) if vmem <= (64 << 20) else (4 << 20)


# ----------------------------- streaming kernels -----------------------------
# grid = (bs, n_tiles); reduction axis last ("arbitrary"), batch "parallel".

def _masked_mean_stream_kernel(vals_ref, mask_ref, out_ref, acc_ref, *,
                               n, n_tile, ragged):
    k = pl.program_id(1)

    @pl.when(k == 0)
    def _init():
        acc_ref[...] = jnp.zeros_like(acc_ref)

    v = vals_ref[0].astype(jnp.float32)      # (n_tile, c)
    m = mask_ref[0].astype(jnp.float32)      # (1, n_tile), lane-dense
    if ragged:
        start = k * n_tile
        lane = lax.broadcasted_iota(jnp.int32, (1, n_tile), 1)
        m = jnp.where(lane + start < n, m, 0.0)
        row = lax.broadcasted_iota(jnp.int32, (n_tile, 1), 0)
        v = jnp.where(row + start < n, v, 0.0)
    # Sublane reduction as an MXU matmul: (1,nt) @ (nt,c) -> (1,c).
    part = jnp.dot(m, v, preferred_element_type=jnp.float32)
    acc_ref[...] += part.reshape(acc_ref.shape)

    @pl.when(k == pl.num_programs(1) - 1)
    def _finalize():
        out_ref[...] = acc_ref[...]          # raw f32 sums; divide in wrapper


def _masked_max_stream_kernel(vals_ref, mask_ref, out_ref, acc_ref, *,
                              n, n_tile, ragged):
    k = pl.program_id(1)

    @pl.when(k == 0)
    def _init():
        acc_ref[...] = jnp.full_like(acc_ref, -jnp.inf)

    v = vals_ref[0].astype(jnp.float32)      # (n_tile, c)
    keep = mask_ref[0] > 0                   # (n_tile, 1)
    if ragged:
        row = lax.broadcasted_iota(jnp.int32, (n_tile, 1), 0)
        keep = jnp.logical_and(keep, row + k * n_tile < n)
    masked = jnp.where(keep, v, jnp.float32(-1e38))
    tile_max = jnp.max(masked, axis=0, keepdims=True)   # (1, c)
    acc_ref[...] = jnp.maximum(acc_ref[...], tile_max.reshape(acc_ref.shape))

    @pl.when(k == pl.num_programs(1) - 1)
    def _finalize():
        out_ref[...] = acc_ref[...].astype(out_ref.dtype)


def _plain_mean_stream_kernel(vals_ref, out_ref, acc_ref, *,
                              n, n_tile, ragged, inv_n):
    k = pl.program_id(1)

    @pl.when(k == 0)
    def _init():
        acc_ref[...] = jnp.zeros_like(acc_ref)

    v = vals_ref[0].astype(jnp.float32)      # (n_tile, c)
    w = jnp.ones((1, n_tile), jnp.float32)
    if ragged:
        start = k * n_tile
        lane = lax.broadcasted_iota(jnp.int32, (1, n_tile), 1)
        w = jnp.where(lane + start < n, w, 0.0)
        row = lax.broadcasted_iota(jnp.int32, (n_tile, 1), 0)
        v = jnp.where(row + start < n, v, 0.0)
    part = jnp.dot(w, v, preferred_element_type=jnp.float32)
    acc_ref[...] += part.reshape(acc_ref.shape)

    @pl.when(k == pl.num_programs(1) - 1)
    def _finalize():
        out_ref[...] = (acc_ref[...] * jnp.float32(inv_n)).astype(out_ref.dtype)


# ---------------------------- batch-folded kernels ---------------------------
# grid = (cdiv(bs, b_tile),); whole-n reduction per step (small-n regime).

def _masked_mean_fold_kernel(vals_ref, mask_ref, out_ref):
    v = vals_ref[...].astype(jnp.float32)    # (b_tile, n, c)
    m = mask_ref[...].astype(jnp.float32)    # (b_tile, n, 1)
    out_ref[...] = jnp.sum(v * m, axis=1, keepdims=True)


def _masked_max_fold_kernel(vals_ref, mask_ref, out_ref):
    v = vals_ref[...].astype(jnp.float32)
    keep = mask_ref[...] > 0
    masked = jnp.where(keep, v, jnp.float32(-1e38))
    out_ref[...] = jnp.max(masked, axis=1, keepdims=True).astype(out_ref.dtype)


def _plain_mean_fold_kernel(vals_ref, out_ref, *, inv_n):
    s = jnp.sum(vals_ref[...].astype(jnp.float32), axis=1, keepdims=True)
    out_ref[...] = (s * jnp.float32(inv_n)).astype(out_ref.dtype)


# --------------------------------- wrappers ----------------------------------

def _masked_pool(vals, mask, mean):
    bs, n, c = vals.shape
    itemsize = jnp.dtype(vals.dtype).itemsize
    budget = _tile_budget_bytes()
    c_pad = _round_up(c, _LANES)

    cost = pl.CostEstimate(
        flops=2 * bs * n * c, transcendentals=0,
        bytes_accessed=bs * n * (c + 1) * itemsize + bs * c * 4)

    # On-chip bytes of one batch's vals + sublane-oriented mask (lane-padded).
    per_batch = _round_up(n, _SUBLANES) * (c_pad + _LANES) * itemsize

    if per_batch <= budget or n < _LANES:
        # ---- batch-folded path (small n) ----
        b_tile = max(1, min(bs, budget // max(per_batch, 1)))
        nb = pl.cdiv(bs, b_tile)
        mask_sub = mask.astype(vals.dtype).reshape(bs, n, 1)
        kernel = _masked_mean_fold_kernel if mean else _masked_max_fold_kernel
        out_dtype = jnp.float32 if mean else vals.dtype
        res = pl.pallas_call(
            kernel,
            out_shape=jax.ShapeDtypeStruct((bs, 1, c), out_dtype),
            grid=(nb,),
            in_specs=[
                pl.BlockSpec((b_tile, n, c), lambda b: (b, 0, 0)),
                pl.BlockSpec((b_tile, n, 1), lambda b: (b, 0, 0)),
            ],
            out_specs=pl.BlockSpec((b_tile, 1, c), lambda b: (b, 0, 0)),
            compiler_params=pltpu.CompilerParams(
                dimension_semantics=("parallel",),
                vmem_limit_bytes=_VMEM_LIMIT),
            cost_estimate=cost,
        )(vals, mask_sub)
    else:
        # ---- streaming path (large n) ----
        if mean:
            # vals row (lane-padded) + lane-dense f32 mask (8 sublanes x 4B).
            row_bytes = c_pad * itemsize + _SUBLANES * 4
        else:
            # vals row + (nt,1) mask row, both lane-padded to 128.
            row_bytes = (c_pad + _LANES) * itemsize
        n_tile = max(_LANES, _round_down(budget // row_bytes, _LANES))
        n_tile = min(n_tile, _round_up(n, _LANES))
        n_tiles = pl.cdiv(n, n_tile)
        ragged = (n % n_tile) != 0

        if mean:
            mask_lane = mask.astype(jnp.float32).reshape(bs, 1, n)
            kernel = functools.partial(_masked_mean_stream_kernel,
                                       n=n, n_tile=n_tile, ragged=ragged)
            res = pl.pallas_call(
                kernel,
                out_shape=jax.ShapeDtypeStruct((bs, 1, c), jnp.float32),
                grid=(bs, n_tiles),
                in_specs=[
                    pl.BlockSpec((1, n_tile, c), lambda b, k: (b, k, 0)),
                    pl.BlockSpec((1, 1, n_tile), lambda b, k: (b, 0, k)),
                ],
                out_specs=pl.BlockSpec((1, 1, c), lambda b, k: (b, 0, 0)),
                scratch_shapes=[pltpu.VMEM((1, 1, c), jnp.float32)],
                compiler_params=pltpu.CompilerParams(
                    dimension_semantics=("parallel", "arbitrary"),
                    vmem_limit_bytes=_VMEM_LIMIT),
                cost_estimate=cost,
            )(vals, mask_lane)
        else:
            mask_sub = mask.astype(vals.dtype).reshape(bs, n, 1)
            kernel = functools.partial(_masked_max_stream_kernel,
                                       n=n, n_tile=n_tile, ragged=ragged)
            res = pl.pallas_call(
                kernel,
                out_shape=jax.ShapeDtypeStruct((bs, 1, c), vals.dtype),
                grid=(bs, n_tiles),
                in_specs=[
                    pl.BlockSpec((1, n_tile, c), lambda b, k: (b, k, 0)),
                    pl.BlockSpec((1, n_tile, 1), lambda b, k: (b, k, 0)),
                ],
                out_specs=pl.BlockSpec((1, 1, c), lambda b, k: (b, 0, 0)),
                scratch_shapes=[pltpu.VMEM((1, 1, c), jnp.float32)],
                compiler_params=pltpu.CompilerParams(
                    dimension_semantics=("parallel", "arbitrary"),
                    vmem_limit_bytes=_VMEM_LIMIT),
                cost_estimate=cost,
            )(vals, mask_sub)

    if mean:
        cnt = jnp.sum(mask, axis=-1)
        cnt = jnp.where(cnt == 0, jnp.ones_like(cnt), cnt).astype(jnp.float32)
        return (res.reshape(bs, c) / cnt[:, None]).astype(vals.dtype)
    return res.reshape(bs, c)


def _plain_mean(vals):
    bs, n, c = vals.shape
    itemsize = jnp.dtype(vals.dtype).itemsize
    budget = _tile_budget_bytes()
    c_pad = _round_up(c, _LANES)
    inv_n = 1.0 / float(n)

    cost = pl.CostEstimate(
        flops=2 * bs * n * c, transcendentals=0,
        bytes_accessed=bs * n * c * itemsize + bs * c * itemsize)

    per_batch = _round_up(n, _SUBLANES) * c_pad * itemsize
    if per_batch <= budget or n < _LANES:
        b_tile = max(1, min(bs, budget // max(per_batch, 1)))
        nb = pl.cdiv(bs, b_tile)
        kernel = functools.partial(_plain_mean_fold_kernel, inv_n=inv_n)
        out = pl.pallas_call(
            kernel,
            out_shape=jax.ShapeDtypeStruct((bs, 1, c), vals.dtype),
            grid=(nb,),
            in_specs=[pl.BlockSpec((b_tile, n, c), lambda b: (b, 0, 0))],
            out_specs=pl.BlockSpec((b_tile, 1, c), lambda b: (b, 0, 0)),
            compiler_params=pltpu.CompilerParams(
                dimension_semantics=("parallel",),
                vmem_limit_bytes=_VMEM_LIMIT),
            cost_estimate=cost,
        )(vals)
        return out.reshape(bs, c)

    row_bytes = c_pad * itemsize
    n_tile = max(_LANES, _round_down(budget // row_bytes, _LANES))
    n_tile = min(n_tile, _round_up(n, _LANES))
    n_tiles = pl.cdiv(n, n_tile)
    ragged = (n % n_tile) != 0
    kernel = functools.partial(_plain_mean_stream_kernel,
                               n=n, n_tile=n_tile, ragged=ragged, inv_n=inv_n)
    out = pl.pallas_call(
        kernel,
        out_shape=jax.ShapeDtypeStruct((bs, 1, c), vals.dtype),
        grid=(bs, n_tiles),
        in_specs=[pl.BlockSpec((1, n_tile, c), lambda b, k: (b, k, 0))],
        out_specs=pl.BlockSpec((1, 1, c), lambda b, k: (b, 0, 0)),
        scratch_shapes=[pltpu.VMEM((1, 1, c), jnp.float32)],
        compiler_params=pltpu.CompilerParams(
            dimension_semantics=("parallel", "arbitrary"),
            vmem_limit_bytes=_VMEM_LIMIT),
        cost_estimate=cost,
    )(vals)
    return out.reshape(bs, c)


def global_pool(x, mean=False):
    """Pallas equivalent of GlobalPool.forward.

    x: [coords (bs,n,d), vals (bs,n,c), mask (bs,n)]   or   [coords, vals]
    """
    if len(x) == 2:
        return _plain_mean(x[1])
    coords, vals, mask = x
    del coords  # unused, as in the PyTorch module
    return _masked_pool(vals, mask, mean)


# --------------------------- reference (pure JAX) ----------------------------

def global_pool_ref(x, mean=False):
    if len(x) == 2:
        return jnp.mean(x[1], axis=1)
    _, vals, mask = x
    if mean:
        summed = jnp.sum(jnp.where(mask[..., None], vals, jnp.zeros_like(vals)), axis=1)
        cnt = jnp.sum(mask, axis=-1).astype(vals.dtype)[..., None]
        cnt = jnp.where(cnt == 0, jnp.ones_like(cnt), cnt)
        return summed / cnt
    masked = jnp.where(mask[..., None], vals, jnp.full_like(vals, -1e38))
    return jnp.max(masked, axis=1)


# ------------------------------------ main ------------------------------------

if __name__ == "__main__":
    d = 3

    # 1) Small shapes (batch-folded path).
    k1, k2, k3 = jax.random.split(jax.random.PRNGKey(0), 3)
    bs, n, c = 2, 8, 32
    coords = jax.random.normal(k1, (bs, n, d), dtype=jnp.float32)
    vals = jax.random.normal(k2, (bs, n, c), dtype=jnp.float32)
    mask = jax.random.bernoulli(k3, p=0.7, shape=(bs, n))

    out = jax.block_until_ready(global_pool([coords, vals, mask], mean=False))
    np.testing.assert_allclose(np.asarray(out),
                               np.asarray(global_pool_ref([coords, vals, mask], mean=False)),
                               rtol=1e-5, atol=1e-6)
    out = jax.block_until_ready(global_pool([coords, vals, mask], mean=True))
    np.testing.assert_allclose(np.asarray(out),
                               np.asarray(global_pool_ref([coords, vals, mask], mean=True)),
                               rtol=1e-5, atol=1e-6)
    out = jax.block_until_ready(global_pool([coords, vals]))
    np.testing.assert_allclose(np.asarray(out),
                               np.asarray(global_pool_ref([coords, vals])),
                               rtol=1e-5, atol=1e-6)

    # 2) Ragged small shapes + fully-masked batch row (still folded).
    k4, k5, k6 = jax.random.split(jax.random.PRNGKey(1), 3)
    bs2, n2, c2 = 2, 13, 48
    coords2 = jax.random.normal(k4, (bs2, n2, d), dtype=jnp.float32)
    vals2 = jax.random.normal(k5, (bs2, n2, c2), dtype=jnp.float32)
    mask2 = jax.random.bernoulli(k6, p=0.6, shape=(bs2, n2)).at[0].set(False)

    for m_flag, rt, at in ((False, 1e-5, 1e-6), (True, 1e-5, 1e-6)):
        out = jax.block_until_ready(global_pool([coords2, vals2, mask2], mean=m_flag))
        np.testing.assert_allclose(np.asarray(out),
                                   np.asarray(global_pool_ref([coords2, vals2, mask2], mean=m_flag)),
                                   rtol=rt, atol=at)
    out = jax.block_until_ready(global_pool([coords2, vals2]))
    np.testing.assert_allclose(np.asarray(out),
                               np.asarray(global_pool_ref([coords2, vals2])),
                               rtol=1e-5, atol=1e-6)

    # 3) Large ragged n (streaming path with in-kernel iota masking).
    #    Mean tolerances allow for the MXU bf16-pass path on f32 inputs
    #    (matches XLA's default f32 matmul precision on TPU).
    k7, k8, k9 = jax.random.split(jax.random.PRNGKey(2), 3)
    bs3, n3, c3 = 2, 17001, 128
    coords3 = jax.random.normal(k7, (bs3, n3, d), dtype=jnp.float32)
    vals3 = jax.random.normal(k8, (bs3, n3, c3), dtype=jnp.float32)
    mask3 = jax.random.bernoulli(k9, p=0.8, shape=(bs3, n3))

    out = jax.block_until_ready(global_pool([coords3, vals3, mask3], mean=False))
    np.testing.assert_allclose(np.asarray(out),
                               np.asarray(global_pool_ref([coords3, vals3, mask3], mean=False)),
                               rtol=1e-5, atol=1e-5)
    out = jax.block_until_ready(global_pool([coords3, vals3, mask3], mean=True))
    np.testing.assert_allclose(np.asarray(out),
                               np.asarray(global_pool_ref([coords3, vals3, mask3], mean=True)),
                               rtol=2e-2, atol=2e-3)
    out = jax.block_until_ready(global_pool([coords3, vals3]))
    np.testing.assert_allclose(np.asarray(out),
                               np.asarray(global_pool_ref([coords3, vals3])),
                               rtol=2e-2, atol=2e-3)

    print("KERNEL_OK")
</pallas_src>

<mosaic_0001>
module attributes {stable_mosaic.version = 11 : i64} {
  func.func @_masked_max_fold_kernel(%arg0: i32, %arg1: memref<2x8x32xf32, #tpu.memory_space<vmem>>, %arg2: memref<2x8x1xf32, #tpu.memory_space<vmem>>, %arg3: memref<2x1x32xf32, #tpu.memory_space<vmem>>) attributes {dimension_semantics = [#tpu.dimension_semantics<parallel>], iteration_bounds = array<i64: 1>, scalar_prefetch = 0 : i64, scratch_operands = 0 : i64, tpu.core_type = #tpu.core_type<tc>, window_params = [{transform_indices = @transform_0, window_bounds = array<i64: 2, 8, 32>}, {transform_indices = @transform_1, window_bounds = array<i64: 2, 8, 1>}, {transform_indices = @transform_2, window_bounds = array<i64: 2, 1, 32>}]} {
    %c0 = arith.constant 0 : index
    %c0_0 = arith.constant 0 : index
    %c0_1 = arith.constant 0 : index
    %0 = vector.load %arg1[%c0, %c0_0, %c0_1] : memref<2x8x32xf32, #tpu.memory_space<vmem>>, vector<2x8x32xf32>
    %c0_2 = arith.constant 0 : index
    %c0_3 = arith.constant 0 : index
    %c0_4 = arith.constant 0 : index
    %1 = vector.load %arg2[%c0_2, %c0_3, %c0_4] : memref<2x8x1xf32, #tpu.memory_space<vmem>>, vector<2x8x1xf32>
    %cst = arith.constant 0.000000e+00 : f32
    %2 = vector.broadcast %cst : f32 to vector<2x8x1xf32>
    %3 = arith.cmpf ogt, %1, %2 : vector<2x8x1xf32>
    %cst_5 = arith.constant -9.99999968E+37 : f32
    %4 = vector.shape_cast %3 : vector<2x8x1xi1> to vector<2x8x1xi1>
    %5 = vector.broadcast %4 : vector<2x8x1xi1> to vector<2x8x32xi1>
    %6 = vector.broadcast %cst_5 : f32 to vector<2x8x32xf32>
    %7 = arith.select %5, %0, %6 : vector<2x8x32xi1>, vector<2x8x32xf32>
    %cst_6 = arith.constant dense<0xFF800000> : vector<2x32xf32>
    %8 = vector.multi_reduction <maximumf>, %7, %cst_6 [1] : vector<2x8x32xf32> to vector<2x32xf32>
    %9 = vector.shape_cast %8 : vector<2x32xf32> to vector<2x1x32xf32>
    %c0_7 = arith.constant 0 : index
    %c0_8 = arith.constant 0 : index
    %c0_9 = arith.constant 0 : index
    %10 = vector.load %arg3[%c0_7, %c0_8, %c0_9] : memref<2x1x32xf32, #tpu.memory_space<vmem>>, vector<2x1x32xf32>
    tpu.vector_store %arg3[%c0_7, %c0_8, %c0_9], %9 {strides = array<i32>} : memref<2x1x32xf32, #tpu.memory_space<vmem>>, vector<2x1x32xf32>,
    return
  }
  func.func @transform_0(%arg0: i32) -> (i32, i32, i32) {
    %c0_i32 = arith.constant 0 : i32
    %c0_i32_0 = arith.constant 0 : i32
    %c0_i32_1 = arith.constant 0 : i32
    return %arg0, %c0_i32, %c0_i32_0 : i32, i32, i32
  }
  func.func @transform_1(%arg0: i32) -> (i32, i32, i32) {
    %c0_i32 = arith.constant 0 : i32
    %c0_i32_0 = arith.constant 0 : i32
    %c0_i32_1 = arith.constant 0 : i32
    return %arg0, %c0_i32, %c0_i32_0 : i32, i32, i32
  }
  func.func @transform_2(%arg0: i32) -> (i32, i32, i32) {
    %c0_i32 = arith.constant 0 : i32
    %c0_i32_0 = arith.constant 0 : i32
    %c0_i32_1 = arith.constant 0 : i32
    return %arg0, %c0_i32, %c0_i32_0 : i32, i32, i32
  }
}

</mosaic_0001>

<llo_original>
// kernel: tpu_custom_call.1
$region0: #{tpu_custom_call.1}
  #allocation0 [shape = 'u32[]', space=smem, size = 0x4, offset = 0x4, fixed_abs, tag = 'smem constant byte address 0x4 - core index']
  #allocation1 [shape = 'u32[144,128]{1,0:T(1,128)}', space=vmem, size = 0x12000, scoped, tag = 'internal scratch']
  %s0 = inlined_call_operand.vmem [shape: f32[2,8,32], index: 0, kind: input, shape index: {}]
  %s1 = inlined_call_operand.vmem [shape: f32[2,8,1], index: 1, kind: input, shape index: {}]
  %s2 = inlined_call_operand.hbm [shape: f32[2,1,32], index: 2, kind: output, shape index: {}]
  %s3 = sld [smem:[#allocation0]]
  $region18: #{tpu_custom_call.1} parent=0
    _
  %s5 = ssub.s32 1, %s3
  %s6 = scalar_select 0, %s5, %s3
  $region1: #{tpu_custom_call.1} parent=0
    #allocation2 [shape = 'u8[1024]{0}', space=vmem, size = 0x400, scoped, tag = 'output window, operand 0, single buffered']
    #allocation3 [shape = 's32[1]{0}', space=sflag, size = 0x4, scoped, tag = 'scoped memory for tpu_custom_call.1']
    %7 = vsyncpa [#allocation3], 0
    // Predicated region
    $region2: #{tpu_custom_call.1} parent=1 // pred_check
      _
    $region3: #{tpu_custom_call.1} parent=1 // pred_check_branch
      %9 = sbr.rel (0) target = $region5
    $region4: #{tpu_custom_call.1} parent=1 // pred_region
      _
    $region5: #{tpu_custom_call.1} parent=1 // pred_fallthru
      _
    // Predicated region
    $region6: #{tpu_custom_call.1} parent=1 // pred_check
      _
    $region7: #{tpu_custom_call.1} parent=1 // pred_check_branch
      %11 = sbr.rel (0) target = $region9
    $region8: #{tpu_custom_call.1} parent=1 // pred_region
      _
    $region9: #{tpu_custom_call.1} parent=1 // pred_fallthru
      _
    %v12 = vld [vmem:[%s0] sm:$0xff]
    %v13 = vld [vmem:[%s0 + $0x8] sm:$0xff]
    %v14 = vld [vmem:[%s1] sm:$0xff]
    %v15 = vld [vmem:[%s1 + $0x8] sm:$0xff]
    %vm16 = vcmp.gt.f32.partialorder %v14, 0.0
    %vm17 = vcmp.gt.f32.partialorder %v15, 0.0
    %v18 = vsel %vm16, 1, 0
    %v19 = vsel %vm17, 1, 0
    %20 = vset.pattern.permute.xlu0 0
    %21 = vperm.xlu0 %20, %v18
    %v22 = vpop.permute.xlu0 %21
    %23 = vset.pattern.permute.xlu0 0
    %24 = vperm.xlu0 %23, %v19
    %v25 = vpop.permute.xlu0 %24
    %vm26 = vcmp.eq.s32.totalorder %v22, 1
    %vm27 = vcmp.eq.s32.totalorder %v25, 1
    %v28 = vsel %vm26, %v12, -1e+38
    %v29 = vsel %vm27, %v13, -1e+38
    %vm30 = vcmask 261120
    %v31 = vsel %vm30, %v28, -inf
    %v32 = vrot.slane %v31, 4
    %v33 = vmax.f32 %v31, %v32
    %v34 = vrot.slane %v33, 2
    %v35 = vmax.f32 %v33, %v34
    %v36 = vrot.slane %v35, 1
    %v37 = vmax.f32 %v35, %v36
    %v38 = vsel %vm30, %v29, -inf
    %v39 = vrot.slane %v38, 4
    %v40 = vmax.f32 %v38, %v39
    %v41 = vrot.slane %v40, 2
    %v42 = vmax.f32 %v40, %v41
    %v43 = vrot.slane %v42, 1
    %v44 = vmax.f32 %v42, %v43
    %vm45 = vcmask 253952
    %46 = vst.msk [vmem:[#allocation2] sm:$0x1] %vm45, %v37
    %47 = vst.msk [vmem:[#allocation2 + $0x1] sm:$0x1] %vm45, %v44
    // Predicated region
    $region10: #{tpu_custom_call.1} parent=1 // pred_check
      _
    $region11: #{tpu_custom_call.1} parent=1 // pred_check_branch
      %49 = sbr.rel (0) target = $region13
    $region12: #{tpu_custom_call.1} parent=1 // pred_region
      %s51 = ssub.s32 32, 32
      %52 = vsyncadd [#allocation3], %s51
      %s53 = sshll.u32 [#allocation2], 4
      %s54 = int_to_ptr.vmem [resolvable:$true] %s53
      %59 = dma.vmem_to_hbm [thread:$0]  %s54, 32, %s2, [#allocation3], 16, 16, 1
    $region13: #{tpu_custom_call.1} parent=1 // pred_fallthru
      _
    // Predicated region
    $region14: #{tpu_custom_call.1} parent=1 // pred_check
      _
    $region15: #{tpu_custom_call.1} parent=1 // pred_check_branch
      %61 = sbr.rel (0) target = $region17
    $region16: #{tpu_custom_call.1} parent=1 // pred_region
      %62 = dma.done [#allocation3], 32
    $region17: #{tpu_custom_call.1} parent=1 // pred_fallthru
      _
    %63 = vsyncpa [#allocation3], 1

</llo_original>
